<compile_context>
chip_gen: v5e
topology: v5e:2x2
jax: 0.10.0
libtpu: 0.0.40
codegen_flags: <defaults>
</compile_context>

<pallas_src>
import jax
import jax.numpy as jnp
from jax import lax
from jax.experimental import pallas as pl
from jax.experimental.pallas import tpu as pltpu

SQRT2_INV = 0.7071067811865476
LN_EPS = 1e-5


def _round_up(x, m):
    return (x + m - 1) // m * m


def _gelu_exact(x):
    # PyTorch nn.GELU() default: 0.5 * x * (1 + erf(x / sqrt(2)))
    return 0.5 * x * (1.0 + lax.erf(x * SQRT2_INV))


def _vmem_capacity_bytes():
    """Physical VMEM per TensorCore; conservative fallback if query fails."""
    try:
        return int(pltpu.get_tpu_info().vmem_capacity_bytes)
    except Exception:
        return 64 * 1024 * 1024   # assume the smallest generation (v7x)


def _choose_tm(n, d_pad, vmem_cap):
    """Row tile: power-of-two multiple of 8, adapted to D / VMEM, >=2 steps."""
    n_r8 = _round_up(max(n, 1), 8)
    if n_r8 <= 8:
        return 8
    small_vmem = vmem_cap <= 64 * 1024 * 1024          # v7x
    if small_vmem:
        tm = 128 if d_pad >= 1024 else 256
    else:                                              # v5e / v6e (128 MiB)
        tm = 512 if d_pad <= 256 else 256
    # Halve until there are >= 2 grid steps (megacore sharding on v7x).
    while tm > 8 and n_r8 <= tm:
        tm //= 2
    return max(tm, 8)


def _make_kernel(d_true, h_pad, o_pad, h_chunk):
    """Kernel specialized on true in_dim (LN divisor) and hidden chunking."""
    inv_d = 1.0 / d_true

    def kernel(x_ref, w1_ref, b1_ref, g_ref, beta_ref,
               w2_ref, b2_ref, w3_ref, b3_ref, o_ref):
        x = x_ref[...]                                        # (TM, d_pad) f32

        # linear_1 (bf16 MXU operands, f32 accumulation) + GELU + residual.
        h = jnp.dot(x.astype(jnp.bfloat16), w1_ref[...],
                    preferred_element_type=jnp.float32)
        h = _gelu_exact(h + b1_ref[...]) + x

        # LayerNorm over the true feature width.  Padded lanes of h are
        # exactly zero (zero-padded x, W1, b1), so no lane mask is needed.
        mean = jnp.sum(h, axis=-1, keepdims=True) * inv_d
        var = jnp.sum(h * h, axis=-1, keepdims=True) * inv_d - mean * mean
        h = (h - mean) * lax.rsqrt(var + LN_EPS) * g_ref[...] + beta_ref[...]
        hb = h.astype(jnp.bfloat16)

        # linear_2 (D -> 3D) + GELU + linear_3 (3D -> out), chunked over the
        # 3D hidden dim so the live f32 intermediate is (TM, h_chunk).
        acc = jnp.zeros((x.shape[0], o_pad), jnp.float32)
        for s in range(0, h_pad, h_chunk):
            e = min(s + h_chunk, h_pad)
            hc = jnp.dot(hb, w2_ref[:, s:e],
                         preferred_element_type=jnp.float32) + b2_ref[:, s:e]
            hc = _gelu_exact(hc)
            acc = acc + jnp.dot(hc.astype(jnp.bfloat16), w3_ref[s:e, :],
                                preferred_element_type=jnp.float32)
        o_ref[...] = (acc + b3_ref[...]).astype(o_ref.dtype)

    return kernel


def init_params(key, in_dim, out_dim):
    """True-shape f32 parameters, weights pre-transposed to (in, out)."""
    ks = jax.random.split(key, 6)
    s1 = 1.0 / jnp.sqrt(in_dim)
    s3 = 1.0 / jnp.sqrt(3 * in_dim)
    return {
        "w1": jax.random.uniform(ks[0], (in_dim, in_dim), jnp.float32, -s1, s1),
        "b1": jax.random.uniform(ks[1], (1, in_dim), jnp.float32, -s1, s1),
        "w2": jax.random.uniform(ks[2], (in_dim, 3 * in_dim), jnp.float32, -s1, s1),
        "b2": jax.random.uniform(ks[3], (1, 3 * in_dim), jnp.float32, -s1, s1),
        "w3": jax.random.uniform(ks[4], (3 * in_dim, out_dim), jnp.float32, -s3, s3),
        "b3": jax.random.uniform(ks[5], (1, out_dim), jnp.float32, -s3, s3),
        "gamma": jnp.ones((1, in_dim), jnp.float32),   # nn.LayerNorm defaults
        "beta": jnp.zeros((1, in_dim), jnp.float32),
    }


def prepare_params(params, in_dim, out_dim):
    """One-time: pad feature dims to 128 multiples; weights to bf16."""
    d_pad = _round_up(in_dim, 128)
    h_pad = _round_up(3 * in_dim, 128)
    o_pad = _round_up(out_dim, 128)

    def pad2(a, r, c):
        if a.shape == (r, c):
            return a
        return jnp.pad(a, ((0, r - a.shape[0]), (0, c - a.shape[1])))

    return {
        "in_dim": in_dim, "out_dim": out_dim,
        "d_pad": d_pad, "h_pad": h_pad, "o_pad": o_pad,
        "w1": pad2(params["w1"], d_pad, d_pad).astype(jnp.bfloat16),
        "b1": pad2(params["b1"], 1, d_pad).astype(jnp.float32),
        "gamma": pad2(params["gamma"], 1, d_pad).astype(jnp.float32),
        "beta": pad2(params["beta"], 1, d_pad).astype(jnp.float32),
        "w2": pad2(params["w2"], d_pad, h_pad).astype(jnp.bfloat16),
        "b2": pad2(params["b2"], 1, h_pad).astype(jnp.float32),
        "w3": pad2(params["w3"], h_pad, o_pad).astype(jnp.bfloat16),
        "b3": pad2(params["b3"], 1, o_pad).astype(jnp.float32),
    }


def inverted_residual(x, prep):
    """x: (..., in_dim) float32. prep: output of prepare_params()."""
    in_dim, out_dim = prep["in_dim"], prep["out_dim"]
    d_pad, h_pad, o_pad = prep["d_pad"], prep["h_pad"], prep["o_pad"]

    lead = x.shape[:-1]
    n = 1
    for s in lead:
        n *= s
    x2d = x.reshape(n, in_dim)
    if x2d.dtype != jnp.float32:
        x2d = x2d.astype(jnp.float32)

    vmem_cap = _vmem_capacity_bytes()
    tm = _choose_tm(n, d_pad, vmem_cap)
    n_pad = _round_up(n, tm)

    if n_pad != n or d_pad != in_dim:                 # no-op when aligned
        x2d = jnp.pad(x2d, ((0, n_pad - n), (0, d_pad - in_dim)))

    # Hidden-dim chunk for the linear_2/linear_3 stage (multiple of 128).
    h_chunk = h_pad if h_pad <= 512 else 512

    grid = (n_pad // tm,)
    row = lambda i: (i, 0)      # per-row-tile blocks (pipelined)
    const = lambda i: (0, 0)    # weights / params: VMEM-resident

    def const_spec(shape):
        # Constant-index operands never change block -> single-buffer them.
        try:
            return pl.BlockSpec(shape, const, pipeline_mode=pl.Buffered(1))
        except TypeError:       # older jax without pipeline_mode kwarg
            return pl.BlockSpec(shape, const)

    # Generation-aware VMEM cap: v7x has 64 MiB physical, v5e/v6e 128 MiB.
    if vmem_cap <= 64 * 1024 * 1024:
        vmem_limit = 48 * 1024 * 1024
    else:
        vmem_limit = 100 * 1024 * 1024

    wbytes = 2 * (d_pad * d_pad + d_pad * h_pad + h_pad * o_pad)
    cost = pl.CostEstimate(
        flops=2 * n_pad * (d_pad * d_pad + d_pad * h_pad + h_pad * o_pad),
        transcendentals=n_pad * (d_pad + h_pad),
        bytes_accessed=n_pad * d_pad * 4 + wbytes
        + 4 * (4 * d_pad + h_pad + o_pad) + n_pad * o_pad * 4,
    )

    out = pl.pallas_call(
        _make_kernel(in_dim, h_pad, o_pad, h_chunk),
        out_shape=jax.ShapeDtypeStruct((n_pad, o_pad), jnp.float32),
        grid=grid,
        in_specs=[
            pl.BlockSpec((tm, d_pad), row),        # x (double-buffered)
            const_spec((d_pad, d_pad)),            # w1 (resident, 1x buffer)
            const_spec((1, d_pad)),                # b1
            const_spec((1, d_pad)),                # gamma
            const_spec((1, d_pad)),                # beta
            const_spec((d_pad, h_pad)),            # w2
            const_spec((1, h_pad)),                # b2
            const_spec((h_pad, o_pad)),            # w3
            const_spec((1, o_pad)),                # b3
        ],
        out_specs=pl.BlockSpec((tm, o_pad), row),
        compiler_params=pltpu.CompilerParams(
            dimension_semantics=("parallel",),
            vmem_limit_bytes=vmem_limit,
        ),
        cost_estimate=cost,
    )(x2d, prep["w1"], prep["b1"], prep["gamma"], prep["beta"],
      prep["w2"], prep["b2"], prep["w3"], prep["b3"])

    if n_pad != n or o_pad != out_dim:                # no-op when aligned
        out = out[:n, :out_dim]
    return out.reshape(*lead, out_dim)


def reference(x2d, p):
    """Pure-JAX reference emulating the kernel's bf16 matmul operands."""
    bf = lambda a: a.astype(jnp.bfloat16).astype(jnp.float32)
    h = bf(x2d) @ bf(p["w1"]) + p["b1"][0]
    h = _gelu_exact(h) + x2d
    mean = jnp.mean(h, axis=-1, keepdims=True)
    var = jnp.mean((h - mean) ** 2, axis=-1, keepdims=True)
    h = (h - mean) * lax.rsqrt(var + LN_EPS) * p["gamma"][0] + p["beta"][0]
    h = _gelu_exact(bf(h) @ bf(p["w2"]) + p["b2"][0])
    return bf(h) @ bf(p["w3"]) + p["b3"][0]


if __name__ == "__main__":
    key = jax.random.PRNGKey(0)
    k_x, k_p = jax.random.split(key)

    batch, seq, in_dim, out_dim = 2, 8, 32, 32
    x = jax.random.normal(k_x, (batch, seq, in_dim), jnp.float32)
    params = init_params(k_p, in_dim, out_dim)
    prep = prepare_params(params, in_dim, out_dim)

    y = inverted_residual(x, prep)
    y = jax.block_until_ready(y)

    y_ref = reference(x.reshape(-1, in_dim), params).reshape(batch, seq, out_dim)
    assert y.shape == (batch, seq, out_dim)
    assert jnp.allclose(y, y_ref, atol=5e-3, rtol=5e-3), "mismatch vs JAX reference"

    print("KERNEL_OK")
</pallas_src>

<mosaic_0001>
module attributes {stable_mosaic.version = 11 : i64} {
  func.func @kernel(%arg0: i32, %arg1: memref<8x128xf32, #tpu.memory_space<vmem>>, %arg2: memref<128x128xbf16, #tpu.memory_space<vmem>>, %arg3: memref<1x128xf32, #tpu.memory_space<vmem>>, %arg4: memref<1x128xf32, #tpu.memory_space<vmem>>, %arg5: memref<1x128xf32, #tpu.memory_space<vmem>>, %arg6: memref<128x128xbf16, #tpu.memory_space<vmem>>, %arg7: memref<1x128xf32, #tpu.memory_space<vmem>>, %arg8: memref<128x128xbf16, #tpu.memory_space<vmem>>, %arg9: memref<1x128xf32, #tpu.memory_space<vmem>>, %arg10: memref<8x128xf32, #tpu.memory_space<vmem>>) attributes {dimension_semantics = [#tpu.dimension_semantics<parallel>], iteration_bounds = array<i64: 2>, scalar_prefetch = 0 : i64, scratch_operands = 0 : i64, tpu.core_type = #tpu.core_type<tc>, window_params = [{transform_indices = @transform_0, window_bounds = array<i64: 8, 128>}, {pipeline_mode = #tpu.pipeline_mode<synchronous>, transform_indices = @transform_1, window_bounds = array<i64: 128, 128>}, {pipeline_mode = #tpu.pipeline_mode<synchronous>, transform_indices = @transform_2, window_bounds = array<i64: 1, 128>}, {pipeline_mode = #tpu.pipeline_mode<synchronous>, transform_indices = @transform_3, window_bounds = array<i64: 1, 128>}, {pipeline_mode = #tpu.pipeline_mode<synchronous>, transform_indices = @transform_4, window_bounds = array<i64: 1, 128>}, {pipeline_mode = #tpu.pipeline_mode<synchronous>, transform_indices = @transform_5, window_bounds = array<i64: 128, 128>}, {pipeline_mode = #tpu.pipeline_mode<synchronous>, transform_indices = @transform_6, window_bounds = array<i64: 1, 128>}, {pipeline_mode = #tpu.pipeline_mode<synchronous>, transform_indices = @transform_7, window_bounds = array<i64: 128, 128>}, {pipeline_mode = #tpu.pipeline_mode<synchronous>, transform_indices = @transform_8, window_bounds = array<i64: 1, 128>}, {transform_indices = @transform_9, window_bounds = array<i64: 8, 128>}]} {
    %c0 = arith.constant 0 : index
    %c0_0 = arith.constant 0 : index
    %0 = vector.load %arg1[%c0, %c0_0] : memref<8x128xf32, #tpu.memory_space<vmem>>, vector<8x128xf32>
    %1 = arith.truncf %0 : vector<8x128xf32> to vector<8x128xbf16>
    %c0_1 = arith.constant 0 : index
    %c0_2 = arith.constant 0 : index
    %2 = vector.load %arg2[%c0_1, %c0_2] : memref<128x128xbf16, #tpu.memory_space<vmem>>, vector<128x128xbf16>
    %cst = arith.constant dense<0.000000e+00> : vector<8x128xf32>
    %3 = tpu.matmul %1, %2, %cst {dimension_numbers = #tpu.dot_dimension_numbers<[1], [0], [0], [1], [0, 0, 1, 1], [], []>} : vector<8x128xbf16>, vector<128x128xbf16>, vector<8x128xf32> -> vector<8x128xf32>
    %c0_3 = arith.constant 0 : index
    %c0_4 = arith.constant 0 : index
    %4 = vector.load %arg3[%c0_3, %c0_4] : memref<1x128xf32, #tpu.memory_space<vmem>>, vector<1x128xf32>
    %5 = vector.broadcast %4 : vector<1x128xf32> to vector<8x128xf32>
    %6 = arith.addf %3, %5 : vector<8x128xf32>
    %cst_5 = arith.constant 5.000000e-01 : f32
    %7 = vector.broadcast %cst_5 : f32 to vector<8x128xf32>
    %8 = arith.mulf %7, %6 : vector<8x128xf32>
    %cst_6 = arith.constant 0.707106769 : f32
    %9 = vector.broadcast %cst_6 : f32 to vector<8x128xf32>
    %10 = arith.mulf %6, %9 : vector<8x128xf32>
    %11 = math.erf %10 : vector<8x128xf32>
    %cst_7 = arith.constant 1.000000e+00 : f32
    %12 = vector.broadcast %cst_7 : f32 to vector<8x128xf32>
    %13 = arith.addf %12, %11 : vector<8x128xf32>
    %14 = arith.mulf %8, %13 : vector<8x128xf32>
    %15 = arith.addf %14, %0 : vector<8x128xf32>
    %cst_8 = arith.constant dense<0.000000e+00> : vector<8xf32>
    %16 = vector.multi_reduction <add>, %15, %cst_8 [1] : vector<8x128xf32> to vector<8xf32>
    %17 = vector.shape_cast %16 : vector<8xf32> to vector<8x1xf32>
    %cst_9 = arith.constant 3.125000e-02 : f32
    %18 = vector.broadcast %cst_9 : f32 to vector<8x1xf32>
    %19 = arith.mulf %17, %18 : vector<8x1xf32>
    %20 = arith.mulf %15, %15 : vector<8x128xf32>
    %cst_10 = arith.constant dense<0.000000e+00> : vector<8xf32>
    %21 = vector.multi_reduction <add>, %20, %cst_10 [1] : vector<8x128xf32> to vector<8xf32>
    %22 = vector.shape_cast %21 : vector<8xf32> to vector<8x1xf32>
    %cst_11 = arith.constant 3.125000e-02 : f32
    %23 = vector.broadcast %cst_11 : f32 to vector<8x1xf32>
    %24 = arith.mulf %22, %23 : vector<8x1xf32>
    %25 = arith.mulf %19, %19 : vector<8x1xf32>
    %26 = arith.subf %24, %25 : vector<8x1xf32>
    %27 = vector.broadcast %19 : vector<8x1xf32> to vector<8x128xf32>
    %28 = arith.subf %15, %27 : vector<8x128xf32>
    %cst_12 = arith.constant 9.99999974E-6 : f32
    %29 = vector.broadcast %cst_12 : f32 to vector<8x1xf32>
    %30 = arith.addf %26, %29 : vector<8x1xf32>
    %31 = math.rsqrt %30 : vector<8x1xf32>
    %32 = vector.broadcast %31 : vector<8x1xf32> to vector<8x128xf32>
    %33 = arith.mulf %28, %32 : vector<8x128xf32>
    %c0_13 = arith.constant 0 : index
    %c0_14 = arith.constant 0 : index
    %34 = vector.load %arg4[%c0_13, %c0_14] : memref<1x128xf32, #tpu.memory_space<vmem>>, vector<1x128xf32>
    %35 = vector.broadcast %34 : vector<1x128xf32> to vector<8x128xf32>
    %36 = arith.mulf %33, %35 : vector<8x128xf32>
    %c0_15 = arith.constant 0 : index
    %c0_16 = arith.constant 0 : index
    %37 = vector.load %arg5[%c0_15, %c0_16] : memref<1x128xf32, #tpu.memory_space<vmem>>, vector<1x128xf32>
    %38 = vector.broadcast %37 : vector<1x128xf32> to vector<8x128xf32>
    %39 = arith.addf %36, %38 : vector<8x128xf32>
    %40 = arith.truncf %39 : vector<8x128xf32> to vector<8x128xbf16>
    %cst_17 = arith.constant 0.000000e+00 : f32
    %41 = vector.broadcast %cst_17 : f32 to vector<8x128xf32>
    %c0_18 = arith.constant 0 : index
    %c0_19 = arith.constant 0 : index
    %42 = vector.load %arg6[%c0_18, %c0_19] : memref<128x128xbf16, #tpu.memory_space<vmem>>, vector<128x128xbf16>
    %cst_20 = arith.constant dense<0.000000e+00> : vector<8x128xf32>
    %43 = tpu.matmul %40, %42, %cst_20 {dimension_numbers = #tpu.dot_dimension_numbers<[1], [0], [0], [1], [0, 0, 1, 1], [], []>} : vector<8x128xbf16>, vector<128x128xbf16>, vector<8x128xf32> -> vector<8x128xf32>
    %c0_21 = arith.constant 0 : index
    %c0_22 = arith.constant 0 : index
    %44 = vector.load %arg7[%c0_21, %c0_22] : memref<1x128xf32, #tpu.memory_space<vmem>>, vector<1x128xf32>
    %45 = vector.broadcast %44 : vector<1x128xf32> to vector<8x128xf32>
    %46 = arith.addf %43, %45 : vector<8x128xf32>
    %cst_23 = arith.constant 5.000000e-01 : f32
    %47 = vector.broadcast %cst_23 : f32 to vector<8x128xf32>
    %48 = arith.mulf %47, %46 : vector<8x128xf32>
    %cst_24 = arith.constant 0.707106769 : f32
    %49 = vector.broadcast %cst_24 : f32 to vector<8x128xf32>
    %50 = arith.mulf %46, %49 : vector<8x128xf32>
    %51 = math.erf %50 : vector<8x128xf32>
    %cst_25 = arith.constant 1.000000e+00 : f32
    %52 = vector.broadcast %cst_25 : f32 to vector<8x128xf32>
    %53 = arith.addf %52, %51 : vector<8x128xf32>
    %54 = arith.mulf %48, %53 : vector<8x128xf32>
    %55 = arith.truncf %54 : vector<8x128xf32> to vector<8x128xbf16>
    %c0_26 = arith.constant 0 : index
    %c0_27 = arith.constant 0 : index
    %56 = vector.load %arg8[%c0_26, %c0_27] : memref<128x128xbf16, #tpu.memory_space<vmem>>, vector<128x128xbf16>
    %cst_28 = arith.constant dense<0.000000e+00> : vector<8x128xf32>
    %57 = tpu.matmul %55, %56, %cst_28 {dimension_numbers = #tpu.dot_dimension_numbers<[1], [0], [0], [1], [0, 0, 1, 1], [], []>} : vector<8x128xbf16>, vector<128x128xbf16>, vector<8x128xf32> -> vector<8x128xf32>
    %58 = arith.addf %41, %57 : vector<8x128xf32>
    %c0_29 = arith.constant 0 : index
    %c0_30 = arith.constant 0 : index
    %59 = vector.load %arg9[%c0_29, %c0_30] : memref<1x128xf32, #tpu.memory_space<vmem>>, vector<1x128xf32>
    %60 = vector.broadcast %59 : vector<1x128xf32> to vector<8x128xf32>
    %61 = arith.addf %58, %60 : vector<8x128xf32>
    %c0_31 = arith.constant 0 : index
    %c0_32 = arith.constant 0 : index
    %62 = vector.load %arg10[%c0_31, %c0_32] : memref<8x128xf32, #tpu.memory_space<vmem>>, vector<8x128xf32>
    tpu.vector_store %arg10[%c0_31, %c0_32], %61 {strides = array<i32>} : memref<8x128xf32, #tpu.memory_space<vmem>>, vector<8x128xf32>,
    return
  }
  func.func @transform_0(%arg0: i32) -> (i32, i32) {
    %c0_i32 = arith.constant 0 : i32
    %c0_i32_0 = arith.constant 0 : i32
    return %arg0, %c0_i32 : i32, i32
  }
  func.func @transform_1(%arg0: i32) -> (i32, i32) {
    %c0_i32 = arith.constant 0 : i32
    %c0_i32_0 = arith.constant 0 : i32
    %c0_i32_1 = arith.constant 0 : i32
    return %c0_i32, %c0_i32_0 : i32, i32
  }
  func.func @transform_2(%arg0: i32) -> (i32, i32) {
    %c0_i32 = arith.constant 0 : i32
    %c0_i32_0 = arith.constant 0 : i32
    %c0_i32_1 = arith.constant 0 : i32
    return %c0_i32, %c0_i32_0 : i32, i32
  }
  func.func @transform_3(%arg0: i32) -> (i32, i32) {
    %c0_i32 = arith.constant 0 : i32
    %c0_i32_0 = arith.constant 0 : i32
    %c0_i32_1 = arith.constant 0 : i32
    return %c0_i32, %c0_i32_0 : i32, i32
  }
  func.func @transform_4(%arg0: i32) -> (i32, i32) {
    %c0_i32 = arith.constant 0 : i32
    %c0_i32_0 = arith.constant 0 : i32
    %c0_i32_1 = arith.constant 0 : i32
    return %c0_i32, %c0_i32_0 : i32, i32
  }
  func.func @transform_5(%arg0: i32) -> (i32, i32) {
    %c0_i32 = arith.constant 0 : i32
    %c0_i32_0 = arith.constant 0 : i32
    %c0_i32_1 = arith.constant 0 : i32
    return %c0_i32, %c0_i32_0 : i32, i32
  }
  func.func @transform_6(%arg0: i32) -> (i32, i32) {
    %c0_i32 = arith.constant 0 : i32
    %c0_i32_0 = arith.constant 0 : i32
    %c0_i32_1 = arith.constant 0 : i32
    return %c0_i32, %c0_i32_0 : i32, i32
  }
  func.func @transform_7(%arg0: i32) -> (i32, i32) {
    %c0_i32 = arith.constant 0 : i32
    %c0_i32_0 = arith.constant 0 : i32
    %c0_i32_1 = arith.constant 0 : i32
    return %c0_i32, %c0_i32_0 : i32, i32
  }
  func.func @transform_8(%arg0: i32) -> (i32, i32) {
    %c0_i32 = arith.constant 0 : i32
    %c0_i32_0 = arith.constant 0 : i32
    %c0_i32_1 = arith.constant 0 : i32
    return %c0_i32, %c0_i32_0 : i32, i32
  }
  func.func @transform_9(%arg0: i32) -> (i32, i32) {
    %c0_i32 = arith.constant 0 : i32
    %c0_i32_0 = arith.constant 0 : i32
    return %arg0, %c0_i32 : i32, i32
  }
}

</mosaic_0001>

<llo_original>
// kernel: tpu_custom_call.1
$region0: #{tpu_custom_call.1}
  #allocation0 [shape = 'u32[]', space=smem, size = 0x4, offset = 0x4, fixed_abs, tag = 'smem constant byte address 0x4 - core index']
  #allocation1 [shape = 'u32[72,128]{1,0:T(1,128)}', space=vmem, size = 0x9000, scoped, tag = 'internal scratch']
  %s0 = inlined_call_operand.hbm [shape: f32[16,128], index: 0, kind: input, shape index: {}]
  %s1 = inlined_call_operand.hbm [shape: bf16[128,128], index: 1, kind: input, shape index: {}]
  %s2 = inlined_call_operand.vmem [shape: f32[1,128], index: 2, kind: input, shape index: {}]
  %s3 = inlined_call_operand.vmem [shape: f32[1,128], index: 3, kind: input, shape index: {}]
  %s4 = inlined_call_operand.vmem [shape: f32[1,128], index: 4, kind: input, shape index: {}]
  %s5 = inlined_call_operand.hbm [shape: bf16[128,128], index: 5, kind: input, shape index: {}]
  %s6 = inlined_call_operand.vmem [shape: f32[1,128], index: 6, kind: input, shape index: {}]
  %s7 = inlined_call_operand.hbm [shape: bf16[128,128], index: 7, kind: input, shape index: {}]
  %s8 = inlined_call_operand.vmem [shape: f32[1,128], index: 8, kind: input, shape index: {}]
  %s9 = inlined_call_operand.hbm [shape: f32[16,128], index: 9, kind: output, shape index: {}]
  %s10 = sld [smem:[#allocation0]]
  $region85: #{tpu_custom_call.1} parent=0
    _
  %s12 = ssub.s32 1, %s10
  %s13 = scalar_select 0, %s12, %s10
  $region1: #{tpu_custom_call.1} parent=0
    #allocation2 [shape = 'u8[8192]{0}', space=vmem, size = 0x2000, scoped, tag = 'input window, operand 0']
    #allocation3 [shape = 's32[2]{0}', space=sflag, size = 0x8, scoped, tag = 'scoped memory for tpu_custom_call.1']
    #allocation4 [shape = 's32[2]{0}', space=sflag, size = 0x8, scoped, tag = 'scoped memory for tpu_custom_call.1']
    #allocation5 [shape = 'u8[32768]{0}', space=vmem, size = 0x8000, scoped, tag = 'input window, operand 1, single buffered']
    #allocation6 [shape = 's32[1]{0}', space=sflag, size = 0x4, scoped, tag = 'scoped memory for tpu_custom_call.1']
    #allocation7 [shape = 'u8[32768]{0}', space=vmem, size = 0x8000, scoped, tag = 'input window, operand 5, single buffered']
    #allocation8 [shape = 'u8[32768]{0}', space=vmem, size = 0x8000, scoped, tag = 'input window, operand 7, single buffered']
    #allocation9 [shape = 's32[1]{0}', space=sflag, size = 0x4, scoped, tag = 'scoped memory for tpu_custom_call.1']
    #allocation10 [shape = 'u8[8192]{0}', space=vmem, size = 0x2000, scoped, tag = 'output window, operand 0']
    %14 = vsyncpa [#allocation3], 0
    %s15 = scalar_lea.sflag [#allocation3], 1
    %16 = vsyncpa %s15, 0
    %17 = vsyncpa [#allocation6], 0
    %18 = vsyncpa [#allocation9], 0
    %19 = vsyncpa [#allocation4], 0
    %s20 = scalar_lea.sflag [#allocation4], 1
    %21 = vsyncpa %s20, 0
    loop: start=0, step=1, limit=4
    $region2: #{tpu_custom_call.1} parent=1 // loop_pre_header
      _
    $region3: #{tpu_custom_call.1} parent=1 // loop_header
      %s23 = sphi 0, %s27
      %p24 = scmp.ge.s32.totalorder %s23, 4
      %s33 = sphi 0, %s35
      %s36 = sphi 0, %s33
      %s37 = sphi 0, %s36
      %s53 = sphi 0, %s37
      %s57 = sphi 0, %s57
      %s59 = sphi 0, %s57
      %s60 = sphi 0, %s59
      %s74 = sphi 0, %s60
      %s78 = sphi 0, %s78
      %s80 = sphi 0, %s78
      %s81 = sphi 0, %s80
      %s95 = sphi 0, %s81
      %s99 = sphi 0, %s99
      %s101 = sphi 0, %s99
      %s102 = sphi 0, %s101
      %s116 = sphi 0, %s102
      %s120 = sphi 0, %s120
      %s122 = sphi 0, %s120
      %s123 = sphi 0, %s122
      %s137 = sphi 0, %s123
      %s141 = sphi 0, %s141
      %s143 = sphi 0, %s141
      %s144 = sphi 0, %s143
      %s158 = sphi 0, %s144
      %s162 = sphi 0, %s162
      %s164 = sphi 0, %s162
      %s165 = sphi 0, %s164
      %s179 = sphi 0, %s165
      %s183 = sphi 0, %s183
      %s185 = sphi 0, %s183
      %s186 = sphi 0, %s185
      %s200 = sphi 0, %s186
      %s204 = sphi 0, %s204
      %s206 = sphi 0, %s204
      %s207 = sphi 0, %s206
      %s221 = sphi 0, %s207
      %s227 = sphi 0, %s229
      %s230 = sphi 0, %s227
      %s231 = sphi 0, %s230
      %s247 = sphi 0, %s231
    $region4: #{tpu_custom_call.1} parent=1 // loop_header_branch
      %26 = sbr.rel (%p24) target = $region8
    $region5: #{tpu_custom_call.1} parent=1 // loop_body
      %s28 = ssub.s32 %s23, 1
      %s29 = ssub.s32 %s23, 2
      %s30 = sadd.s32 %s23, 1
      %s31 = ssub.s32 %s23, %s30
      %p32 = scmp.eq.s32.totalorder %s31, 0
      %s34 = sadd.s32 %s33, 1
      %s35 = scalar_select %p32, %s33, %s34
      %p38 = pneg %p32
      %p39 = scmp.eq.s32.totalorder %s23, 1
      %p40 = por %p38, %p39
      %p41 = scmp.ne.s32.totalorder %s33, %s36
      %p42 = scmp.eq.s32.totalorder %s23, 0
      %p43 = por %p41, %p42
      %p44 = scmp.ne.s32.totalorder %s33, %s36
      %p45 = scmp.eq.s32.totalorder %s28, 1
      %p46 = por %p44, %p45
      %p47 = scmp.ne.s32.totalorder %s36, %s37
      %p48 = scmp.eq.s32.totalorder %s28, 0
      %p49 = por %p47, %p48
      %p50 = scmp.ne.s32.totalorder %s36, %s37
      %p51 = scmp.eq.s32.totalorder %s29, 1
      %p52 = por %p50, %p51
      %p54 = scmp.ne.s32.totalorder %s37, %s53
      %p55 = scmp.eq.s32.totalorder %s29, 0
      %p56 = por %p54, %p55
      %s58 = sadd.s32 %s57, 1
      %p61 = scmp.eq.s32.totalorder %s23, 1
      %p62 = scmp.ne.s32.totalorder %s57, %s59
      %p63 = scmp.eq.s32.totalorder %s23, 0
      %p64 = por %p62, %p63
      %p65 = scmp.ne.s32.totalorder %s57, %s59
      %p66 = scmp.eq.s32.totalorder %s28, 1
      %p67 = por %p65, %p66
      %p68 = scmp.ne.s32.totalorder %s59, %s60
      %p69 = scmp.eq.s32.totalorder %s28, 0
      %p70 = por %p68, %p69
      %p71 = scmp.ne.s32.totalorder %s59, %s60
      %p72 = scmp.eq.s32.totalorder %s29, 1
      %p73 = por %p71, %p72
      %p75 = scmp.ne.s32.totalorder %s60, %s74
      %p76 = scmp.eq.s32.totalorder %s29, 0
      %p77 = por %p75, %p76
      %s79 = sadd.s32 %s78, 1
      %p82 = scmp.eq.s32.totalorder %s23, 1
      %p83 = scmp.ne.s32.totalorder %s78, %s80
      %p84 = scmp.eq.s32.totalorder %s23, 0
      %p85 = por %p83, %p84
      %p86 = scmp.ne.s32.totalorder %s78, %s80
      %p87 = scmp.eq.s32.totalorder %s28, 1
      %p88 = por %p86, %p87
      %p89 = scmp.ne.s32.totalorder %s80, %s81
      %p90 = scmp.eq.s32.totalorder %s28, 0
      %p91 = por %p89, %p90
      %p92 = scmp.ne.s32.totalorder %s80, %s81
      %p93 = scmp.eq.s32.totalorder %s29, 1
      %p94 = por %p92, %p93
      %p96 = scmp.ne.s32.totalorder %s81, %s95
      %p97 = scmp.eq.s32.totalorder %s29, 0
      %p98 = por %p96, %p97
      %s100 = sadd.s32 %s99, 1
      %p103 = scmp.eq.s32.totalorder %s23, 1
      %p104 = scmp.ne.s32.totalorder %s99, %s101
      %p105 = scmp.eq.s32.totalorder %s23, 0
      %p106 = por %p104, %p105
      %p107 = scmp.ne.s32.totalorder %s99, %s101
      %p108 = scmp.eq.s32.totalorder %s28, 1
      %p109 = por %p107, %p108
      %p110 = scmp.ne.s32.totalorder %s101, %s102
      %p111 = scmp.eq.s32.totalorder %s28, 0
      %p112 = por %p110, %p111
      %p113 = scmp.ne.s32.totalorder %s101, %s102
      %p114 = scmp.eq.s32.totalorder %s29, 1
      %p115 = por %p113, %p114
      %p117 = scmp.ne.s32.totalorder %s102, %s116
      %p118 = scmp.eq.s32.totalorder %s29, 0
      %p119 = por %p117, %p118
      %s121 = sadd.s32 %s120, 1
      %p124 = scmp.eq.s32.totalorder %s23, 1
      %p125 = scmp.ne.s32.totalorder %s120, %s122
      %p126 = scmp.eq.s32.totalorder %s23, 0
      %p127 = por %p125, %p126
      %p128 = scmp.ne.s32.totalorder %s120, %s122
      %p129 = scmp.eq.s32.totalorder %s28, 1
      %p130 = por %p128, %p129
      %p131 = scmp.ne.s32.totalorder %s122, %s123
      %p132 = scmp.eq.s32.totalorder %s28, 0
      %p133 = por %p131, %p132
      %p134 = scmp.ne.s32.totalorder %s122, %s123
      %p135 = scmp.eq.s32.totalorder %s29, 1
      %p136 = por %p134, %p135
      %p138 = scmp.ne.s32.totalorder %s123, %s137
      %p139 = scmp.eq.s32.totalorder %s29, 0
      %p140 = por %p138, %p139
      %s142 = sadd.s32 %s141, 1
      %p145 = scmp.eq.s32.totalorder %s23, 1
      %p146 = scmp.ne.s32.totalorder %s141, %s143
      %p147 = scmp.eq.s32.totalorder %s23, 0
      %p148 = por %p146, %p147
      %p149 = scmp.ne.s32.totalorder %s141, %s143
      %p150 = scmp.eq.s32.totalorder %s28, 1
      %p151 = por %p149, %p150
      %p152 = scmp.ne.s32.totalorder %s143, %s144
      %p153 = scmp.eq.s32.totalorder %s28, 0
      %p154 = por %p152, %p153
      %p155 = scmp.ne.s32.totalorder %s143, %s144
      %p156 = scmp.eq.s32.totalorder %s29, 1
      %p157 = por %p155, %p156
      %p159 = scmp.ne.s32.totalorder %s144, %s158
      %p160 = scmp.eq.s32.totalorder %s29, 0
      %p161 = por %p159, %p160
      %s163 = sadd.s32 %s162, 1
      %p166 = scmp.eq.s32.totalorder %s23, 1
      %p167 = scmp.ne.s32.totalorder %s162, %s164
      %p168 = scmp.eq.s32.totalorder %s23, 0
      %p169 = por %p167, %p168
      %p170 = scmp.ne.s32.totalorder %s162, %s164
      %p171 = scmp.eq.s32.totalorder %s28, 1
      %p172 = por %p170, %p171
      %p173 = scmp.ne.s32.totalorder %s164, %s165
      %p174 = scmp.eq.s32.totalorder %s28, 0
      %p175 = por %p173, %p174
      %p176 = scmp.ne.s32.totalorder %s164, %s165
      %p177 = scmp.eq.s32.totalorder %s29, 1
      %p178 = por %p176, %p177
      %p180 = scmp.ne.s32.totalorder %s165, %s179
      %p181 = scmp.eq.s32.totalorder %s29, 0
      %p182 = por %p180, %p181
      %s184 = sadd.s32 %s183, 1
      %p187 = scmp.eq.s32.totalorder %s23, 1
      %p188 = scmp.ne.s32.totalorder %s183, %s185
      %p189 = scmp.eq.s32.totalorder %s23, 0
      %p190 = por %p188, %p189
      %p191 = scmp.ne.s32.totalorder %s183, %s185
      %p192 = scmp.eq.s32.totalorder %s28, 1
      %p193 = por %p191, %p192
      %p194 = scmp.ne.s32.totalorder %s185, %s186
      %p195 = scmp.eq.s32.totalorder %s28, 0
      %p196 = por %p194, %p195
      %p197 = scmp.ne.s32.totalorder %s185, %s186
      %p198 = scmp.eq.s32.totalorder %s29, 1
      %p199 = por %p197, %p198
      %p201 = scmp.ne.s32.totalorder %s186, %s200
      %p202 = scmp.eq.s32.totalorder %s29, 0
      %p203 = por %p201, %p202
      %s205 = sadd.s32 %s204, 1
      %p208 = scmp.eq.s32.totalorder %s23, 1
      %p209 = scmp.ne.s32.totalorder %s204, %s206
      %p210 = scmp.eq.s32.totalorder %s23, 0
      %p211 = por %p209, %p210
      %p212 = scmp.ne.s32.totalorder %s204, %s206
      %p213 = scmp.eq.s32.totalorder %s28, 1
      %p214 = por %p212, %p213
      %p215 = scmp.ne.s32.totalorder %s206, %s207
      %p216 = scmp.eq.s32.totalorder %s28, 0
      %p217 = por %p215, %p216
      %p218 = scmp.ne.s32.totalorder %s206, %s207
      %p219 = scmp.eq.s32.totalorder %s29, 1
      %p220 = por %p218, %p219
      %p222 = scmp.ne.s32.totalorder %s207, %s221
      %p223 = scmp.eq.s32.totalorder %s29, 0
      %p224 = por %p222, %p223
      %s225 = ssub.s32 %s23, %s30
      %p226 = scmp.eq.s32.totalorder %s225, 0
      %s228 = sadd.s32 %s227, 1
      %s229 = scalar_select %p226, %s227, %s228
      %p232 = pneg %p226
      %p233 = scmp.eq.s32.totalorder %s23, 1
      %p234 = por %p232, %p233
      %p235 = scmp.ne.s32.totalorder %s227, %s230
      %p236 = scmp.eq.s32.totalorder %s23, 0
      %p237 = por %p235, %p236
      %p238 = scmp.ne.s32.totalorder %s227, %s230
      %p239 = scmp.eq.s32.totalorder %s28, 1
      %p240 = por %p238, %p239
      %p241 = scmp.ne.s32.totalorder %s230, %s231
      %p242 = scmp.eq.s32.totalorder %s28, 0
      %p243 = por %p241, %p242
      %p244 = scmp.ne.s32.totalorder %s230, %s231
      %p245 = scmp.eq.s32.totalorder %s29, 1
      %p246 = por %p244, %p245
      %p248 = scmp.ne.s32.totalorder %s231, %s247
      %p249 = scmp.eq.s32.totalorder %s29, 0
      %p250 = por %p248, %p249
      %p251 = scmp.le.s32.totalorder 1, %s23
      %p252 = scmp.lt.s32.totalorder %s23, 3
      %p253 = pnand %p251, %p252
      %p254 = pneg %p253
      // Predicated region
      $region9: #{tpu_custom_call.1} parent=5 // pred_check
        _
      $region10: #{tpu_custom_call.1} parent=5 // pred_check_branch
        %256 = sbr.rel (%p253) target = $region12
      $region11: #{tpu_custom_call.1} parent=5 // pred_region
        %s257 = ssub.s32 %s23, 1
        // Predicated region
        $region13: #{tpu_custom_call.1} parent=11 // pred_check
          %p258 = pneg %p70
        $region14: #{tpu_custom_call.1} parent=11 // pred_check_branch
          %260 = sbr.rel (%p258) target = $region16
        $region15: #{tpu_custom_call.1} parent=11 // pred_region
          %262 = vsyncadd [#allocation6], 0
          %s263 = sshll.u32 %s1, 4
          %s264 = int_to_ptr.hbm [resolvable:$true] %s263
          %s265 = sshll.u32 [#allocation5], 4
          %s266 = int_to_ptr.vmem [resolvable:$true] %s265
          %271 = dma.hbm_to_vmem [thread:$0]  %s264, 1024, %s266, [#allocation6], 64, 64, 4
        $region16: #{tpu_custom_call.1} parent=11 // pred_fallthru
          _
        // Predicated region
        $region17: #{tpu_custom_call.1} parent=11 // pred_check
          %p272 = pneg %p91
        $region18: #{tpu_custom_call.1} parent=11 // pred_check_branch
          %274 = sbr.rel (%p272) target = $region20
        $region19: #{tpu_custom_call.1} parent=11 // pred_region
          _
        $region20: #{tpu_custom_call.1} parent=11 // pred_fallthru
          _
        // Predicated region
        $region21: #{tpu_custom_call.1} parent=11 // pred_check
          %p275 = pneg %p112
        $region22: #{tpu_custom_call.1} parent=11 // pred_check_branch
          %277 = sbr.rel (%p275) target = $region24
        $region23: #{tpu_custom_call.1} parent=11 // pred_region
          _
        $region24: #{tpu_custom_call.1} parent=11 // pred_fallthru
          _
        // Predicated region
        $region25: #{tpu_custom_call.1} parent=11 // pred_check
          %p278 = pneg %p133
        $region26: #{tpu_custom_call.1} parent=11 // pred_check_branch
          %280 = sbr.rel (%p278) target = $region28
        $region27: #{tpu_custom_call.1} parent=11 // pred_region
          _
        $region28: #{tpu_custom_call.1} parent=11 // pred_fallthru
          _
        // Predicated region
        $region29: #{tpu_custom_call.1} parent=11 // pred_check
          %p281 = pneg %p154
        $region30: #{tpu_custom_call.1} parent=11 // pred_check_branch
          %283 = sbr.rel (%p281) target = $region32
        $region31: #{tpu_custom_call.1} parent=11 // pred_region
          %285 = vsyncadd [#allocation6], 0
          %s286 = sshll.u32 %s5, 4
          %s287 = int_to_ptr.hbm [resolvable:$true] %s286
          %s288 = sshll.u32 [#allocation7], 4
          %s289 = int_to_ptr.vmem [resolvable:$true] %s288
          %294 = dma.hbm_to_vmem [thread:$0]  %s287, 1024, %s289, [#allocation6], 64, 64, 4
        $region32: #{tpu_custom_call.1} parent=11 // pred_fallthru
          _
        // Predicated region
        $region33: #{tpu_custom_call.1} parent=11 // pred_check
          %p295 = pneg %p175
        $region34: #{tpu_custom_call.1} parent=11 // pred_check_branch
          %297 = sbr.rel (%p295) target = $region36
        $region35: #{tpu_custom_call.1} parent=11 // pred_region
          _
        $region36: #{tpu_custom_call.1} parent=11 // pred_fallthru
          _
        // Predicated region
        $region37: #{tpu_custom_call.1} parent=11 // pred_check
          %p298 = pneg %p196
        $region38: #{tpu_custom_call.1} parent=11 // pred_check_branch
          %300 = sbr.rel (%p298) target = $region40
        $region39: #{tpu_custom_call.1} parent=11 // pred_region
          %302 = vsyncadd [#allocation9], 0
          %s303 = sshll.u32 %s7, 4
          %s304 = int_to_ptr.hbm [resolvable:$true] %s303
          %s305 = sshll.u32 [#allocation8], 4
          %s306 = int_to_ptr.vmem [resolvable:$true] %s305
          %311 = dma.hbm_to_vmem [thread:$0]  %s304, 1024, %s306, [#allocation9], 64, 64, 4
        $region40: #{tpu_custom_call.1} parent=11 // pred_fallthru
          _
        // Predicated region
        $region41: #{tpu_custom_call.1} parent=11 // pred_check
          %p312 = pneg %p217
        $region42: #{tpu_custom_call.1} parent=11 // pred_check_branch
          %314 = sbr.rel (%p312) target = $region44
        $region43: #{tpu_custom_call.1} parent=11 // pred_region
          _
        $region44: #{tpu_custom_call.1} parent=11 // pred_fallthru
          _
      $region12: #{tpu_custom_call.1} parent=5 // pred_fallthru
        _
      %p315 = scmp.lt.s32.totalorder %s23, 2
      // Predicated region
      $region45: #{tpu_custom_call.1} parent=5 // pred_check
        %p316 = pneg %p315
      $region46: #{tpu_custom_call.1} parent=5 // pred_check_branch
        %318 = sbr.rel (%p316) target = $region48
      $region47: #{tpu_custom_call.1} parent=5 // pred_region
        // Predicated region
        $region49: #{tpu_custom_call.1} parent=47 // pred_check
          %p319 = pneg %p43
        $region50: #{tpu_custom_call.1} parent=47 // pred_check_branch
          %321 = sbr.rel (%p319) target = $region52
        $region51: #{tpu_custom_call.1} parent=47 // pred_region
          %s322 = sand.u32 %s33, 1
          %s323 = scalar_lea.sflag [#allocation3], %s322
          %s324 = sand.u32 %s33, 1
          %s325 = smul.addr %s324, 8
          %s326 = scalar_lea.vmem [#allocation2], %s325
          %328 = vsyncadd %s323, 0
          %s329 = smul.addr %s23, 8
          %s330 = scalar_lea.hbm %s0, %s329
          %s332 = sshll.u32 %s330, 4
          %s333 = int_to_ptr.hbm [resolvable:$true] %s332
          %s334 = sshll.u32 %s326, 4
          %s335 = int_to_ptr.vmem [resolvable:$true] %s334
          %337 = dma.hbm_to_vmem [thread:$0]  %s333, 128, %s335, %s323
        $region52: #{tpu_custom_call.1} parent=47 // pred_fallthru
          _
      $region48: #{tpu_custom_call.1} parent=5 // pred_fallthru
        _
      %p338 = scmp.le.s32.totalorder 1, %s23
      %p339 = scmp.lt.s32.totalorder %s23, 3
      %p340 = pnand %p338, %p339
      %p341 = pneg %p340
      // Predicated region
      $region53: #{tpu_custom_call.1} parent=5 // pred_check
        _
      $region54: #{tpu_custom_call.1} parent=5 // pred_check_branch
        %343 = sbr.rel (%p340) target = $region56
      $region55: #{tpu_custom_call.1} parent=5 // pred_region
        %s344 = ssub.s32 %s23, 1
        %s345 = sand.u32 %s36, 1
        %s346 = scalar_lea.sflag [#allocation3], %s345
        %s347 = sand.u32 %s36, 1
        %s348 = smul.addr %s347, 8
        %s349 = scalar_lea.vmem [#allocation2], %s348
        // Predicated region
        $region57: #{tpu_custom_call.1} parent=55 // pred_check
          %p350 = pneg %p49
        $region58: #{tpu_custom_call.1} parent=55 // pred_check_branch
          %352 = sbr.rel (%p350) target = $region60
        $region59: #{tpu_custom_call.1} parent=55 // pred_region
          %354 = dma.done %s346, 128
        $region60: #{tpu_custom_call.1} parent=55 // pred_fallthru
          _
        // Predicated region
        $region61: #{tpu_custom_call.1} parent=55 // pred_check
          %p355 = pneg %p70
        $region62: #{tpu_custom_call.1} parent=55 // pred_check_branch
          %357 = sbr.rel (%p355) target = $region64
        $region63: #{tpu_custom_call.1} parent=55 // pred_region
          %359 = dma.done [#allocation6], 1024
        $region64: #{tpu_custom_call.1} parent=55 // pred_fallthru
          _
        // Predicated region
        $region65: #{tpu_custom_call.1} parent=55 // pred_check
          %p360 = pneg %p154
        $region66: #{tpu_custom_call.1} parent=55 // pred_check_branch
          %362 = sbr.rel (%p360) target = $region68
        $region67: #{tpu_custom_call.1} parent=55 // pred_region
          %364 = dma.done [#allocation6], 1024
        $region68: #{tpu_custom_call.1} parent=55 // pred_fallthru
          _
        // Predicated region
        $region69: #{tpu_custom_call.1} parent=55 // pred_check
          %p365 = pneg %p196
        $region70: #{tpu_custom_call.1} parent=55 // pred_check_branch
          %367 = sbr.rel (%p365) target = $region72
        $region71: #{tpu_custom_call.1} parent=55 // pred_region
          %369 = dma.done [#allocation9], 1024
        $region72: #{tpu_custom_call.1} parent=55 // pred_fallthru
          _
        %s370 = sand.u32 %s36, 1
        %s371 = scalar_lea.sflag [#allocation3], %s370
        %s372 = sand.u32 %s36, 1
        %s373 = smul.addr %s372, 8
        %s374 = scalar_lea.vmem [#allocation2], %s373
        %p375 = pneg %p49
        %p376 = pneg %p46
        %p377 = pneg %p70
        %p378 = pneg %p67
        %p379 = pneg %p91
        %p380 = pneg %p88
        %p381 = pneg %p112
        %p382 = pneg %p109
        %p383 = pneg %p133
        %p384 = pneg %p130
        %p385 = pneg %p154
        %p386 = pneg %p151
        %p387 = pneg %p175
        %p388 = pneg %p172
        %p389 = pneg %p196
        %p390 = pneg %p193
        %p391 = pneg %p217
        %p392 = pneg %p214
        %p393 = pneg %p243
        %p394 = pneg %p240
        %s395 = sand.u32 %s230, 1
        %s396 = scalar_lea.sflag [#allocation4], %s395
        %s397 = sand.u32 %s230, 1
        %s398 = smul.addr %s397, 8
        %s399 = scalar_lea.vmem [#allocation10], %s398
        %v400 = vld [vmem:[%s349] sm:$0xff]
        %v401 = vpack.c.bf16 %v400, %v400
        %v402 = vld [vmem:[#allocation5] sm:$0xf]
        %v403 = vld [vmem:[#allocation5 + $0x4] sm:$0xf]
        %v404 = vld [vmem:[#allocation5 + $0x8] sm:$0xf]
        %v405 = vld [vmem:[#allocation5 + $0xc] sm:$0xf]
        %v406 = vld [vmem:[#allocation5 + $0x10] sm:$0xf]
        %v407 = vld [vmem:[#allocation5 + $0x14] sm:$0xf]
        %v408 = vld [vmem:[#allocation5 + $0x18] sm:$0xf]
        %v409 = vld [vmem:[#allocation5 + $0x1c] sm:$0xf]
        %v410 = vld [vmem:[#allocation5 + $0x20] sm:$0xf]
        %v411 = vld [vmem:[#allocation5 + $0x24] sm:$0xf]
        %v412 = vld [vmem:[#allocation5 + $0x28] sm:$0xf]
        %v413 = vld [vmem:[#allocation5 + $0x2c] sm:$0xf]
        %v414 = vld [vmem:[#allocation5 + $0x30] sm:$0xf]
        %v415 = vld [vmem:[#allocation5 + $0x34] sm:$0xf]
        %v416 = vld [vmem:[#allocation5 + $0x38] sm:$0xf]
        %v417 = vld [vmem:[#allocation5 + $0x3c] sm:$0xf]
        %v418 = vld [vmem:[%s2] sm:$0x1]
        %v420 = vperm.slane %v418, 0
        %v438 = vunpack.c.l.b16 %v402
        %v439 = vunpack.c.l.b16 %v403
        %v440 = vunpack.c.l.b16 %v404
        %v441 = vunpack.c.l.b16 %v405
        %v442 = vunpack.c.l.b16 %v406
        %v443 = vunpack.c.l.b16 %v407
        %v444 = vunpack.c.l.b16 %v408
        %v445 = vunpack.c.l.b16 %v409
        %v446 = vunpack.c.l.b16 %v410
        %v447 = vunpack.c.l.b16 %v411
        %v448 = vunpack.c.l.b16 %v412
        %v449 = vunpack.c.l.b16 %v413
        %v450 = vunpack.c.l.b16 %v414
        %v451 = vunpack.c.l.b16 %v415
        %v452 = vunpack.c.l.b16 %v416
        %v453 = vunpack.c.l.b16 %v417
        %v454 = vpack.c.b16 %v439, %v438
        %v455 = vpack.c.b16 %v441, %v440
        %v456 = vpack.c.b16 %v443, %v442
        %v457 = vpack.c.b16 %v445, %v444
        %v458 = vpack.c.b16 %v447, %v446
        %v459 = vpack.c.b16 %v449, %v448
        %v460 = vpack.c.b16 %v451, %v450
        %v461 = vpack.c.b16 %v453, %v452
        %470 = vmatpush.bf16.msra.mxu0 %v461
        %471 = vmatpush.bf16.msra.mxu0 %v460
        %472 = vmatpush.bf16.msra.mxu0 %v459
        %473 = vmatpush.bf16.msra.mxu0 %v458
        %474 = vmatpush.bf16.msra.mxu0 %v457
        %475 = vmatpush.bf16.msra.mxu0 %v456
        %476 = vmatpush.bf16.msra.mxu0 %v455
        %477 = vmatpush.bf16.msra.mxu0 %v454
        %478 = vmatmul.bf16.gmra.mxu0 %v401
        %v479 = vpop.f32.mrf.mxu0
        %v480 = vadd.f32 %v420, %v479
        %v481 = vpop.f32.mrf.mxu0
        %482 = vdwg.mxu0
        %v483 = vmul.f32 %v480, 0.5
        %v484 = vmul.f32 %v480, 0.70710677
        %v485 = vmul.f32 %v484, %v484
        %v486 = vmin.f32 16.0, %v485
        %v487 = vmul.f32 %v486, 2.1237322e-06
        %v488 = vadd.f32 %v487, 0.00028619796
        %v489 = vmul.f32 %v486, %v488
        %v490 = vadd.f32 %v489, 0.0036580483
        %v491 = vmul.f32 %v486, %v490
        %v492 = vadd.f32 %v491, 0.05243302
        %v493 = vmul.f32 %v486, %v492
        %v494 = vadd.f32 %v493, 0.18741608
        %v495 = vmul.f32 %v486, %v494
        %v496 = vadd.f32 %v495, 1.1283791
        %v497 = vmul.f32 %v484, %v496
        %v498 = vmul.f32 %v486, 3.8918573e-05
        %v499 = vadd.f32 %v498, 0.001143296
        %v500 = vmul.f32 %v486, %v499
        %v501 = vadd.f32 %v500, 0.014752088
        %v502 = vmul.f32 %v486, %v501
        %v503 = vadd.f32 %v502, 0.112945676
        %v504 = vmul.f32 %v486, %v503
        %v505 = vadd.f32 %v504, 0.4994258
        %v506 = vmul.f32 %v486, %v505
        %v507 = vadd.f32 %v506, 1.0
        %v508 = vrcp.pop %v507
        %v509 = vmul.f32 %v507, %v508
        %v510 = vsub.f32 1.0, %v509
        %v511 = vmul.f32 %v508, %v510
        %v512 = vadd.f32 %v508, %v511
        %vm513 = vweird.f32 %v507
        %vm514 = vweird.f32 %v508
        %vm515 = vmor %vm513, %vm514
        %v516 = vsel %vm515, %v508, %v512
        %v517 = vand.u32 2147483647, %v507
        %vm518 = vcmp.eq.f32.partialorder %v517, 8.507059e+37
        %v519 = vand.u32 %v507, 2147483648
        %v520 = vor.u32 1.1754944e-38, %v519
        %v521 = vsel %vm518, %v520, %v516
        %v522 = vmul.f32 %v497, %v521
        %v523 = vmin.f32 %v522, 1.0
        %v524 = vmax.f32 %v523, -1.0
        %v525 = vadd.f32 %v524, 1.0
        %v526 = vmul.f32 %v483, %v525
        %v527 = vadd.f32 %v526, %v400
        %528 = vadd.xlane.f32.xlu0 %v527
        %v529 = vpop.xlane.xlu0 %528
        %v530 = vmul.f32 %v529, 0.03125
        %v531 = vmul.f32 %v527, %v527
        %532 = vadd.xlane.f32.xlu0 %v531
        %v533 = vpop.xlane.xlu0 %532
        %v534 = vmul.f32 %v533, 0.03125
        %v535 = vmul.f32 %v530, %v530
        %v536 = vsub.f32 %v534, %v535
        %v537 = vsub.f32 %v527, %v530
        %v538 = vadd.f32 %v536, 1e-05
        %v539 = vrsqrt.pop %v538
        %v540 = vmul.f32 %v539, %v538
        %v541 = vmul.f32 %v540, %v539
        %v542 = vmul.f32 0.5, %v541
        %v543 = vsub.f32 1.5, %v542
        %v544 = vmul.f32 %v539, %v543
        %vm545 = vweird.f32 %v538
        %vm546 = vweird.f32 %v539
        %vm547 = vmor %vm545, %vm546
        %v548 = vsel %vm547, %v539, %v544
        %v549 = vmul.f32 %v537, %v548
        %v550 = vld [vmem:[%s3] sm:$0x1]
        %v552 = vperm.slane %v550, 0
        %v554 = vmul.f32 %v549, %v552
        %v555 = vld [vmem:[%s4] sm:$0x1]
        %v557 = vperm.slane %v555, 0
        %v559 = vadd.f32 %v554, %v557
        %v560 = vpack.c.bf16 %v559, %v559
        %v561 = vld [vmem:[#allocation7] sm:$0xf]
        %v562 = vld [vmem:[#allocation7 + $0x4] sm:$0xf]
        %v563 = vld [vmem:[#allocation7 + $0x8] sm:$0xf]
        %v564 = vld [vmem:[#allocation7 + $0xc] sm:$0xf]
        %v565 = vld [vmem:[#allocation7 + $0x10] sm:$0xf]
        %v566 = vld [vmem:[#allocation7 + $0x14] sm:$0xf]
        %v567 = vld [vmem:[#allocation7 + $0x18] sm:$0xf]
        %v568 = vld [vmem:[#allocation7 + $0x1c] sm:$0xf]
        %v569 = vld [vmem:[#allocation7 + $0x20] sm:$0xf]
        %v570 = vld [vmem:[#allocation7 + $0x24] sm:$0xf]
        %v571 = vld [vmem:[#allocation7 + $0x28] sm:$0xf]
        %v572 = vld [vmem:[#allocation7 + $0x2c] sm:$0xf]
        %v573 = vld [vmem:[#allocation7 + $0x30] sm:$0xf]
        %v574 = vld [vmem:[#allocation7 + $0x34] sm:$0xf]
        %v575 = vld [vmem:[#allocation7 + $0x38] sm:$0xf]
        %v576 = vld [vmem:[#allocation7 + $0x3c] sm:$0xf]
        %v577 = vld [vmem:[%s6] sm:$0x1]
        %v579 = vperm.slane %v577, 0
        %v597 = vunpack.c.l.b16 %v561
        %v598 = vunpack.c.l.b16 %v562
        %v599 = vunpack.c.l.b16 %v563
        %v600 = vunpack.c.l.b16 %v564
        %v601 = vunpack.c.l.b16 %v565
        %v602 = vunpack.c.l.b16 %v566
        %v603 = vunpack.c.l.b16 %v567
        %v604 = vunpack.c.l.b16 %v568
        %v605 = vunpack.c.l.b16 %v569
        %v606 = vunpack.c.l.b16 %v570
        %v607 = vunpack.c.l.b16 %v571
        %v608 = vunpack.c.l.b16 %v572
        %v609 = vunpack.c.l.b16 %v573
        %v610 = vunpack.c.l.b16 %v574
        %v611 = vunpack.c.l.b16 %v575
        %v612 = vunpack.c.l.b16 %v576
        %v613 = vpack.c.b16 %v598, %v597
        %v614 = vpack.c.b16 %v600, %v599
        %v615 = vpack.c.b16 %v602, %v601
        %v616 = vpack.c.b16 %v604, %v603
        %v617 = vpack.c.b16 %v606, %v605
        %v618 = vpack.c.b16 %v608, %v607
        %v619 = vpack.c.b16 %v610, %v609
        %v620 = vpack.c.b16 %v612, %v611
        %629 = vmatpush.bf16.msra.mxu0 %v620
        %630 = vmatpush.bf16.msra.mxu0 %v619
        %631 = vmatpush.bf16.msra.mxu0 %v618
        %632 = vmatpush.bf16.msra.mxu0 %v617
        %633 = vmatpush.bf16.msra.mxu0 %v616
        %634 = vmatpush.bf16.msra.mxu0 %v615
        %635 = vmatpush.bf16.msra.mxu0 %v614
        %636 = vmatpush.bf16.msra.mxu0 %v613
        %637 = vmatmul.bf16.gmra.mxu0 %v560
        %v638 = vpop.f32.mrf.mxu0
        %v639 = vadd.f32 %v579, %v638
        %v640 = vpop.f32.mrf.mxu0
        %641 = vdwg.mxu0
        %v642 = vmul.f32 %v639, 0.5
        %v643 = vmul.f32 %v639, 0.70710677
        %v644 = vmul.f32 %v643, %v643
        %v645 = vmin.f32 16.0, %v644
        %v646 = vmul.f32 %v645, 2.1237322e-06
        %v647 = vadd.f32 %v646, 0.00028619796
        %v648 = vmul.f32 %v645, %v647
        %v649 = vadd.f32 %v648, 0.0036580483
        %v650 = vmul.f32 %v645, %v649
        %v651 = vadd.f32 %v650, 0.05243302
        %v652 = vmul.f32 %v645, %v651
        %v653 = vadd.f32 %v652, 0.18741608
        %v654 = vmul.f32 %v645, %v653
        %v655 = vadd.f32 %v654, 1.1283791
        %v656 = vmul.f32 %v643, %v655
        %v657 = vmul.f32 %v645, 3.8918573e-05
        %v658 = vadd.f32 %v657, 0.001143296
        %v659 = vmul.f32 %v645, %v658
        %v660 = vadd.f32 %v659, 0.014752088
        %v661 = vmul.f32 %v645, %v660
        %v662 = vadd.f32 %v661, 0.112945676
        %v663 = vmul.f32 %v645, %v662
        %v664 = vadd.f32 %v663, 0.4994258
        %v665 = vmul.f32 %v645, %v664
        %v666 = vadd.f32 %v665, 1.0
        %v667 = vrcp.pop %v666
        %v668 = vmul.f32 %v666, %v667
        %v669 = vsub.f32 1.0, %v668
        %v670 = vmul.f32 %v667, %v669
        %v671 = vadd.f32 %v667, %v670
        %vm672 = vweird.f32 %v666
        %vm673 = vweird.f32 %v667
        %vm674 = vmor %vm672, %vm673
        %v675 = vsel %vm674, %v667, %v671
        %v676 = vand.u32 2147483647, %v666
        %vm677 = vcmp.eq.f32.partialorder %v676, 8.507059e+37
        %v678 = vand.u32 %v666, 2147483648
        %v679 = vor.u32 1.1754944e-38, %v678
        %v680 = vsel %vm677, %v679, %v675
        %v681 = vmul.f32 %v656, %v680
        %v682 = vmin.f32 %v681, 1.0
        %v683 = vmax.f32 %v682, -1.0
        %v684 = vadd.f32 %v683, 1.0
        %v685 = vmul.f32 %v642, %v684
        %v686 = vpack.c.bf16 %v685, %v685
        %v687 = vld [vmem:[#allocation8] sm:$0xf]
        %v688 = vld [vmem:[#allocation8 + $0x4] sm:$0xf]
        %v689 = vld [vmem:[#allocation8 + $0x8] sm:$0xf]
        %v690 = vld [vmem:[#allocation8 + $0xc] sm:$0xf]
        %v691 = vld [vmem:[#allocation8 + $0x10] sm:$0xf]
        %v692 = vld [vmem:[#allocation8 + $0x14] sm:$0xf]
        %v693 = vld [vmem:[#allocation8 + $0x18] sm:$0xf]
        %v694 = vld [vmem:[#allocation8 + $0x1c] sm:$0xf]
        %v695 = vld [vmem:[#allocation8 + $0x20] sm:$0xf]
        %v696 = vld [vmem:[#allocation8 + $0x24] sm:$0xf]
        %v697 = vld [vmem:[#allocation8 + $0x28] sm:$0xf]
        %v698 = vld [vmem:[#allocation8 + $0x2c] sm:$0xf]
        %v699 = vld [vmem:[#allocation8 + $0x30] sm:$0xf]
        %v700 = vld [vmem:[#allocation8 + $0x34] sm:$0xf]
        %v701 = vld [vmem:[#allocation8 + $0x38] sm:$0xf]
        %v702 = vld [vmem:[#allocation8 + $0x3c] sm:$0xf]
        %v703 = vld [vmem:[%s8] sm:$0x1]
        %v705 = vperm.slane %v703, 0
        %v723 = vunpack.c.l.b16 %v687
        %v724 = vunpack.c.l.b16 %v688
        %v725 = vunpack.c.l.b16 %v689
        %v726 = vunpack.c.l.b16 %v690
        %v727 = vunpack.c.l.b16 %v691
        %v728 = vunpack.c.l.b16 %v692
        %v729 = vunpack.c.l.b16 %v693
        %v730 = vunpack.c.l.b16 %v694
        %v731 = vunpack.c.l.b16 %v695
        %v732 = vunpack.c.l.b16 %v696
        %v733 = vunpack.c.l.b16 %v697
        %v734 = vunpack.c.l.b16 %v698
        %v735 = vunpack.c.l.b16 %v699
        %v736 = vunpack.c.l.b16 %v700
        %v737 = vunpack.c.l.b16 %v701
        %v738 = vunpack.c.l.b16 %v702
        %v739 = vpack.c.b16 %v724, %v723
        %v740 = vpack.c.b16 %v726, %v725
        %v741 = vpack.c.b16 %v728, %v727
        %v742 = vpack.c.b16 %v730, %v729
        %v743 = vpack.c.b16 %v732, %v731
        %v744 = vpack.c.b16 %v734, %v733
        %v745 = vpack.c.b16 %v736, %v735
        %v746 = vpack.c.b16 %v738, %v737
        %755 = vmatpush.bf16.msra.mxu0 %v746
        %756 = vmatpush.bf16.msra.mxu0 %v745
        %757 = vmatpush.bf16.msra.mxu0 %v744
        %758 = vmatpush.bf16.msra.mxu0 %v743
        %759 = vmatpush.bf16.msra.mxu0 %v742
        %760 = vmatpush.bf16.msra.mxu0 %v741
        %761 = vmatpush.bf16.msra.mxu0 %v740
        %762 = vmatpush.bf16.msra.mxu0 %v739
        %763 = vmatmul.bf16.gmra.mxu0 %v686
        %v764 = vpop.f32.mrf.mxu0
        %v765 = vadd.f32 %v705, %v764
        %v766 = vpop.f32.mrf.mxu0
        %767 = vdwg.mxu0
        %768 = vst [vmem:[%s399] sm:$0xff] %v765
        %s769 = sand.u32 %s230, 1
        %s770 = scalar_lea.sflag [#allocation4], %s769
        %s771 = sand.u32 %s230, 1
        %s772 = smul.addr %s771, 8
        %s773 = scalar_lea.vmem [#allocation10], %s772
        // Predicated region
        $region73: #{tpu_custom_call.1} parent=55 // pred_check
          %p774 = pneg %p240
        $region74: #{tpu_custom_call.1} parent=55 // pred_check_branch
          %776 = sbr.rel (%p774) target = $region76
        $region75: #{tpu_custom_call.1} parent=55 // pred_region
          %778 = vsyncadd %s770, 0
          %s779 = smul.addr %s28, 8
          %s780 = scalar_lea.hbm %s9, %s779
          %s782 = sshll.u32 %s773, 4
          %s783 = int_to_ptr.vmem [resolvable:$true] %s782
          %s784 = sshll.u32 %s780, 4
          %s785 = int_to_ptr.hbm [resolvable:$true] %s784
          %787 = dma.vmem_to_hbm [thread:$0]  %s783, 128, %s785, %s770
        $region76: #{tpu_custom_call.1} parent=55 // pred_fallthru
          _
      $region56: #{tpu_custom_call.1} parent=5 // pred_fallthru
        _
      %p788 = scmp.le.s32.totalorder 2, %s23
      // Predicated region
      $region77: #{tpu_custom_call.1} parent=5 // pred_check
        %p789 = pneg %p788
      $region78: #{tpu_custom_call.1} parent=5 // pred_check_branch
        %791 = sbr.rel (%p789) target = $region80
      $region79: #{tpu_custom_call.1} parent=5 // pred_region
        %s792 = ssub.s32 %s23, 2
        // Predicated region
        $region81: #{tpu_custom_call.1} parent=79 // pred_check
          %p793 = pneg %p246
        $region82: #{tpu_custom_call.1} parent=79 // pred_check_branch
          %795 = sbr.rel (%p793) target = $region84
        $region83: #{tpu_custom_call.1} parent=79 // pred_region
          %s796 = sand.u32 %s231, 1
          %s797 = scalar_lea.sflag [#allocation4], %s796
          %s798 = sand.u32 %s231, 1
          %s799 = smul.addr %s798, 8
          %s800 = scalar_lea.vmem [#allocation10], %s799
          %802 = dma.done %s797, 128
        $region84: #{tpu_custom_call.1} parent=79 // pred_fallthru
          _
      $region80: #{tpu_custom_call.1} parent=5 // pred_fallthru
        _
    $region6: #{tpu_custom_call.1} parent=1 // loop_footer
      %s27 = sadd.s32 1, %s23
    $region7: #{tpu_custom_call.1} parent=1 // loop_footer_branch
      %22 = sbr.rel target = $region3
    $region8: #{tpu_custom_call.1} parent=1 // loop_exit
      _
    %803 = vsyncpa [#allocation3], 1
    %s804 = scalar_lea.sflag [#allocation3], 1
    %805 = vsyncpa %s804, 1
    %806 = vsyncpa [#allocation6], 1
    %807 = vsyncpa [#allocation9], 1
    %808 = vsyncpa [#allocation4], 1
    %s809 = scalar_lea.sflag [#allocation4], 1
    %810 = vsyncpa %s809, 1

</llo_original>
